<compile_context>
chip_gen: v7x
topology: tpu7x:2x2x1
jax: 0.10.0
libtpu: 0.0.40
codegen_flags: <defaults>
</compile_context>

<pallas_src>
import math

import jax
import jax.numpy as jnp
import numpy as np
from jax.experimental import pallas as pl
from jax.experimental.pallas import tpu as pltpu


# ----------------------------------------------------------------------------
# Fused conv3x3(pad=1) + InstanceNorm2d(affine) + ReLU Pallas kernel
# ----------------------------------------------------------------------------
def _make_conv_in_relu_kernel(Nb, Cin, Cout, H, W):
    HW = H * W
    L = Nb * HW
    eps = 1e-5  # PyTorch InstanceNorm2d default

    def kernel(w_ref, gb_ref, mask_ref, x_ref, o_ref):
        # w_ref   : VMEM [9, Cout, Cin]  per-tap conv weights (t = kh*3 + kw)
        # gb_ref  : VMEM [Cout, 2]       column 0 = gamma, column 1 = beta
        # mask_ref: VMEM [9, L]          0/1 border masks, tiled per sample
        # x_ref   : VMEM [Cin, L]        channel-major, lane-dense input block
        # o_ref   : VMEM [Cout, L]       channel-major, lane-dense output block
        x = x_ref[...]
        masks = mask_ref[...]

        # 3x3 conv as 9 accumulating MXU matmuls over all Nb*HW lanes.  Tap (kh,kw) needs
        # x[.., i+kh-1, j+kw-1] (0 outside the image) = the flattened plane shifted by
        # s = (kh-1)*W + (kw-1); the precomputed mask zeroes every out-of-bounds position,
        # which also covers every lane the roll wraps across plane / sample boundaries.
        # TODO(synk): bf16 x/w (f32 accumulate) would halve DMA traffic on v6e/v7x; kept
        # f32 so elementwise/IN math also stays native on v5e and the f32 check is tight.
        acc = jnp.dot(w_ref[4], x, preferred_element_type=jnp.float32)  # center tap, no mask
        for t in range(9):
            if t == 4:
                continue
            kh, kw = divmod(t, 3)
            s = (kh - 1) * W + (kw - 1)
            xs = pltpu.roll(x, shift=(-s) % L, axis=1) * masks[t:t + 1]
            acc = acc + jnp.dot(w_ref[t], xs, preferred_element_type=jnp.float32)

        gamma = gb_ref[:, 0:1]  # [Cout, 1]
        beta = gb_ref[:, 1:2]   # [Cout, 1]

        # Instance norm + ReLU per sample on static lane slices (HW is a multiple of 128
        # whenever Nb > 1, so the slices stay lane-aligned -> unmasked stores).
        for n in range(Nb):
            y = acc[:, n * HW:(n + 1) * HW]
            mean = jnp.mean(y, axis=-1, keepdims=True)                       # [Cout, 1]
            var = jnp.mean(jnp.square(y - mean), axis=-1, keepdims=True)     # [Cout, 1]
            scale = gamma * jax.lax.rsqrt(var + eps)                         # [Cout, 1]
            shift = beta - mean * scale                                      # [Cout, 1]
            o_ref[:, n * HW:(n + 1) * HW] = jnp.maximum(y * scale + shift, 0.0)

    return kernel


def _border_masks(H, W):
    """0/1 mask per 3x3 tap: mask[kh*3+kw, i*W+j] == 1 iff (i+kh-1, j+kw-1) in bounds."""
    m = np.zeros((9, H * W), np.float32)
    for kh in range(3):
        for kw in range(3):
            di, dj = kh - 1, kw - 1
            plane = np.zeros((H, W), np.float32)
            plane[max(0, -di):min(H, H - di), max(0, -dj):min(W, W - dj)] = 1.0
            m[kh * 3 + kw] = plane.reshape(-1)
    return m


def _choose_batch_block(N, Cin, Cout, HW):
    """Samples per grid step + vmem limit, derived from the chip's VMEM capacity.

    v7x-like chips (<=64 MiB VMEM, 2 TensorCores): prefer an even number of grid steps
    >= 2 so both cores get balanced work.  v5e/v6e (128 MiB, 1 TensorCore): maximize the
    block within the budget (extra grid steps are pure ~0.35 us/step overhead there)."""
    try:
        vmem_cap = int(pltpu.get_tpu_info().vmem_capacity_bytes)
    except Exception:  # older jax / interpret mode: fall back to the smallest (v7x) size
        vmem_cap = None
    cap = vmem_cap if vmem_cap is not None else 64 * 1024 * 1024
    two_tc = vmem_cap is None or vmem_cap <= 80 * 1024 * 1024
    budget = int(0.40 * cap)  # headroom for double-buffering + compiler scratch

    # f32 bytes per sample: x block (x2 double-buffered) + out block (x2) + masks (x2)
    # + live acc + one rolled/masked tap copy.
    per_sample = 4 * HW * (3 * Cin + 3 * Cout + 2 * 9)
    fit = max(1, min(N, budget // max(1, per_sample)))

    def ok(nb):
        # must divide N; non-full blocks need a 128-aligned lane dimension
        return N % nb == 0 and (nb == N or (nb * HW) % 128 == 0)

    cands = [nb for nb in range(fit, 0, -1) if ok(nb)] or [1]
    nb = cands[0]
    if two_tc and N >= 2:
        even = [c for c in cands if (N // c) >= 2 and (N // c) % 2 == 0]
        some = [c for c in cands if (N // c) >= 2]
        nb = even[0] if even else (some[0] if some else nb)

    vmem_limit = min(int(0.75 * cap), 112 * 1024 * 1024) if vmem_cap is not None else None
    return nb, vmem_limit


def conv_instnorm_relu(x, weight, bias, gamma, beta):
    """relu(instance_norm(conv2d(x, weight, bias, padding=1))) for NCHW input."""
    del bias  # per-channel bias before InstanceNorm is exactly cancelled by mean subtraction
    N, Cin, H, W = x.shape
    Cout = weight.shape[0]
    HW = H * W
    Nb, vmem_limit = _choose_batch_block(N, Cin, Cout, HW)
    L = Nb * HW

    # Per-tap weight slices w[:, :, kh, kw] as [9, Cout, Cin] (t = kh*3 + kw).
    w_taps = jnp.transpose(weight, (2, 3, 0, 1)).reshape(9, Cout, Cin).astype(jnp.float32)
    gb = jnp.stack([gamma, beta], axis=1).astype(jnp.float32)        # [Cout, 2]
    masks = jnp.asarray(np.tile(_border_masks(H, W), (1, Nb)))       # [9, Nb*HW]

    # Channel-major, lane-dense activation slab (one XLA transpose each way: layout
    # plumbing that buys lane-aligned unmasked loads/stores + one wide matmul per tap).
    x_cm = jnp.transpose(x.reshape(N, Cin, HW), (1, 0, 2)).reshape(Cin, N * HW)
    x_cm = x_cm.astype(jnp.float32)

    # TODO(synk): for very large spatial sizes add an HW grid axis with a +/-W halo so the
    # per-step block stays bounded on v7x's 64 MiB VMEM; not needed at these shapes.
    kernel = _make_conv_in_relu_kernel(Nb, Cin, Cout, H, W)
    out_cm = pl.pallas_call(
        kernel,
        out_shape=jax.ShapeDtypeStruct((Cout, N * HW), jnp.float32),
        grid=(N // Nb,),
        in_specs=[
            pl.BlockSpec((9, Cout, Cin), lambda b: (0, 0, 0)),
            pl.BlockSpec((Cout, 2), lambda b: (0, 0)),
            pl.BlockSpec((9, L), lambda b: (0, 0)),
            pl.BlockSpec((Cin, L), lambda b: (0, b)),
        ],
        out_specs=pl.BlockSpec((Cout, L), lambda b: (0, b)),
        compiler_params=pltpu.CompilerParams(
            dimension_semantics=("parallel",),
            vmem_limit_bytes=vmem_limit),
    )(w_taps, gb, masks, x_cm)

    return jnp.transpose(out_cm.reshape(Cout, N, HW), (1, 0, 2)).reshape(N, Cout, H, W)


# ----------------------------------------------------------------------------
# Bilinear resize matching F.interpolate(mode='bilinear', align_corners=False),
# expressed as two dense matmuls (MXU) instead of gathers.
# ----------------------------------------------------------------------------
def _interp_matrix(out_size, in_size):
    i = jnp.arange(out_size, dtype=jnp.float32)
    src = jnp.maximum((i + 0.5) * (in_size / out_size) - 0.5, 0.0)
    lo = jnp.minimum(jnp.floor(src).astype(jnp.int32), in_size - 1)
    hi = jnp.minimum(lo + 1, in_size - 1)
    frac = src - lo.astype(jnp.float32)
    return (jax.nn.one_hot(lo, in_size, dtype=jnp.float32) * (1.0 - frac)[:, None]
            + jax.nn.one_hot(hi, in_size, dtype=jnp.float32) * frac[:, None])


def _bilinear_resize_nchw(x, scale_factor):
    # TODO(synk): kept as plain-JAX matmuls (XLA -> MXU); off the fused hot path.
    N, C, H, W = x.shape
    Ho = int(math.floor(H * scale_factor))
    Wo = int(math.floor(W * scale_factor))
    Ah = _interp_matrix(Ho, H)  # [Ho, H]
    Aw = _interp_matrix(Wo, W)  # [Wo, W]
    y = jnp.einsum('oh,nchw->ncow', Ah, x, precision=jax.lax.Precision.HIGHEST)
    return jnp.einsum('ncow,pw->ncop', y, Aw, precision=jax.lax.Precision.HIGHEST)


# ----------------------------------------------------------------------------
# UBlock forward (same branch structure as the PyTorch module)
# ----------------------------------------------------------------------------
def ublock_forward(fmap, params, scale_factor=1.0):
    w, b, g, bt = params
    if scale_factor < 1.0:
        skip = conv_instnorm_relu(fmap, w, b, g, bt)
        fmap = _bilinear_resize_nchw(skip, scale_factor)
        return skip, fmap
    elif scale_factor > 1.0:
        fmap = _bilinear_resize_nchw(fmap, scale_factor)
        return conv_instnorm_relu(fmap, w, b, g, bt), None
    else:
        fmap = conv_instnorm_relu(fmap, w, b, g, bt)
        return fmap, fmap


# ----------------------------------------------------------------------------
# Plain-JAX references (correctness checks)
# ----------------------------------------------------------------------------
def _reference_conv_in_relu(x, w, b, g, bt):
    y = jax.lax.conv_general_dilated(
        x, w, window_strides=(1, 1), padding=((1, 1), (1, 1)),
        dimension_numbers=("NCHW", "OIHW", "NCHW"),
        precision=jax.lax.Precision.HIGHEST)
    y = y + b[None, :, None, None]
    mean = y.mean(axis=(2, 3), keepdims=True)
    var = jnp.mean(jnp.square(y - mean), axis=(2, 3), keepdims=True)
    y = (y - mean) * jax.lax.rsqrt(var + 1e-5)
    y = y * g[None, :, None, None] + bt[None, :, None, None]
    return jnp.maximum(y, 0.0)


def _reference_bilinear(x, scale_factor):
    N, C, H, W = x.shape
    Ho = int(math.floor(H * scale_factor))
    Wo = int(math.floor(W * scale_factor))

    def coords(out_size, in_size):
        i = jnp.arange(out_size, dtype=jnp.float32)
        src = jnp.maximum((i + 0.5) * (in_size / out_size) - 0.5, 0.0)
        lo = jnp.minimum(jnp.floor(src).astype(jnp.int32), in_size - 1)
        hi = jnp.minimum(lo + 1, in_size - 1)
        return lo, hi, src - lo.astype(jnp.float32)

    hl, hh, hf = coords(Ho, H)
    wl, wh, wf = coords(Wo, W)
    rows = (jnp.take(x, hl, axis=2) * (1.0 - hf)[None, None, :, None]
            + jnp.take(x, hh, axis=2) * hf[None, None, :, None])
    return (jnp.take(rows, wl, axis=3) * (1.0 - wf)[None, None, None, :]
            + jnp.take(rows, wh, axis=3) * wf[None, None, None, :])


if __name__ == "__main__":
    key = jax.random.PRNGKey(0)
    N, Cin, Cout, H, W = 2, 4, 8, 16, 16

    kx, kw, kb = jax.random.split(key, 3)
    x = jax.random.normal(kx, (N, Cin, H, W), jnp.float32)

    # Deterministic parameter init (Conv2d: uniform(+/-1/sqrt(fan_in)); InstanceNorm: ones/zeros)
    fan_in = Cin * 3 * 3
    bound = 1.0 / math.sqrt(fan_in)
    w = jax.random.uniform(kw, (Cout, Cin, 3, 3), jnp.float32, -bound, bound)
    b = jax.random.uniform(kb, (Cout,), jnp.float32, -bound, bound)
    g = jnp.ones((Cout,), jnp.float32)
    bt = jnp.zeros((Cout,), jnp.float32)
    params = (w, b, g, bt)

    # Tolerance accommodates the MXU's default f32 matmul precision (possible bf16 passes).
    TOL = 1e-2

    # scale_factor == 1.0 (default) path: (fmap, fmap)
    out1, out2 = ublock_forward(x, params, scale_factor=1.0)
    jax.block_until_ready((out1, out2))
    ref = _reference_conv_in_relu(x, w, b, g, bt)
    assert out1.shape == (N, Cout, H, W)
    assert jnp.allclose(out1, ref, atol=TOL, rtol=TOL), "conv+IN+relu mismatch vs reference"
    assert jnp.allclose(out1, out2), "identity branch must return same tensor twice"

    # scale_factor < 1.0 path: (skip, downsampled)
    skip, down = ublock_forward(x, params, scale_factor=0.5)
    # scale_factor > 1.0 path: (conv(upsampled), None)
    up, none = ublock_forward(x, params, scale_factor=2.0)
    jax.block_until_ready((skip, down, up))
    assert none is None
    assert skip.shape == (N, Cout, H, W)
    assert down.shape == (N, Cout, H // 2, W // 2)
    assert up.shape == (N, Cout, 2 * H, 2 * W)

    # Matmul-form bilinear matches the gather-form reference; skip matches the conv ref.
    assert jnp.allclose(down, _reference_bilinear(skip, 0.5), atol=1e-4, rtol=1e-4)
    assert jnp.allclose(skip, ref, atol=TOL, rtol=TOL)

    print("KERNEL_OK")
</pallas_src>

<mosaic_0001>
module attributes {stable_mosaic.version = 11 : i64} {
  func.func @kernel(%arg0: i32, %arg1: memref<9x8x4xf32, #tpu.memory_space<vmem>>, %arg2: memref<8x2xf32, #tpu.memory_space<vmem>>, %arg3: memref<9x256xf32, #tpu.memory_space<vmem>>, %arg4: memref<4x256xf32, #tpu.memory_space<vmem>>, %arg5: memref<8x256xf32, #tpu.memory_space<vmem>>) attributes {dimension_semantics = [#tpu.dimension_semantics<parallel>], iteration_bounds = array<i64: 2>, scalar_prefetch = 0 : i64, scratch_operands = 0 : i64, tpu.core_type = #tpu.core_type<tc>, window_params = [{pipeline_mode = #tpu.pipeline_mode<synchronous>, transform_indices = @transform_0, window_bounds = array<i64: 9, 8, 4>}, {pipeline_mode = #tpu.pipeline_mode<synchronous>, transform_indices = @transform_1, window_bounds = array<i64: 8, 2>}, {pipeline_mode = #tpu.pipeline_mode<synchronous>, transform_indices = @transform_2, window_bounds = array<i64: 9, 256>}, {transform_indices = @transform_3, window_bounds = array<i64: 4, 256>}, {transform_indices = @transform_4, window_bounds = array<i64: 8, 256>}]} {
    %c0 = arith.constant 0 : index
    %c0_0 = arith.constant 0 : index
    %0 = vector.load %arg4[%c0, %c0_0] : memref<4x256xf32, #tpu.memory_space<vmem>>, vector<4x256xf32>
    %c0_1 = arith.constant 0 : index
    %c0_2 = arith.constant 0 : index
    %1 = vector.load %arg3[%c0_1, %c0_2] : memref<9x256xf32, #tpu.memory_space<vmem>>, vector<9x256xf32>
    %c4 = arith.constant 4 : index
    %c0_3 = arith.constant 0 : index
    %c0_4 = arith.constant 0 : index
    %2 = vector.load %arg1[%c4, %c0_3, %c0_4] : memref<9x8x4xf32, #tpu.memory_space<vmem>>, vector<1x8x4xf32>
    %3 = vector.shape_cast %2 : vector<1x8x4xf32> to vector<8x4xf32>
    %cst = arith.constant dense<0.000000e+00> : vector<8x256xf32>
    %4 = tpu.matmul %3, %0, %cst {dimension_numbers = #tpu.dot_dimension_numbers<[1], [0], [0], [1], [0, 0, 1, 1], [], []>} : vector<8x4xf32>, vector<4x256xf32>, vector<8x256xf32> -> vector<8x256xf32>
    %c17_i32 = arith.constant 17 : i32
    %5 = tpu.dynamic_rotate %0 by %c17_i32 dim 1 : vector<4x256xf32>, i32 -> vector<4x256xf32>
    %6 = vector.extract_strided_slice %1 {offsets = [0, 0], sizes = [1, 256], strides = [1, 1]} : vector<9x256xf32> to vector<1x256xf32>
    %7 = vector.broadcast %6 : vector<1x256xf32> to vector<4x256xf32>
    %8 = arith.mulf %5, %7 : vector<4x256xf32>
    %c0_5 = arith.constant 0 : index
    %c0_6 = arith.constant 0 : index
    %c0_7 = arith.constant 0 : index
    %9 = vector.load %arg1[%c0_5, %c0_6, %c0_7] : memref<9x8x4xf32, #tpu.memory_space<vmem>>, vector<1x8x4xf32>
    %10 = vector.shape_cast %9 : vector<1x8x4xf32> to vector<8x4xf32>
    %cst_8 = arith.constant dense<0.000000e+00> : vector<8x256xf32>
    %11 = tpu.matmul %10, %8, %cst_8 {dimension_numbers = #tpu.dot_dimension_numbers<[1], [0], [0], [1], [0, 0, 1, 1], [], []>} : vector<8x4xf32>, vector<4x256xf32>, vector<8x256xf32> -> vector<8x256xf32>
    %12 = arith.addf %4, %11 : vector<8x256xf32>
    %c16_i32 = arith.constant 16 : i32
    %13 = tpu.dynamic_rotate %0 by %c16_i32 dim 1 : vector<4x256xf32>, i32 -> vector<4x256xf32>
    %14 = vector.extract_strided_slice %1 {offsets = [1, 0], sizes = [1, 256], strides = [1, 1]} : vector<9x256xf32> to vector<1x256xf32>
    %15 = vector.broadcast %14 : vector<1x256xf32> to vector<4x256xf32>
    %16 = arith.mulf %13, %15 : vector<4x256xf32>
    %c1 = arith.constant 1 : index
    %c0_9 = arith.constant 0 : index
    %c0_10 = arith.constant 0 : index
    %17 = vector.load %arg1[%c1, %c0_9, %c0_10] : memref<9x8x4xf32, #tpu.memory_space<vmem>>, vector<1x8x4xf32>
    %18 = vector.shape_cast %17 : vector<1x8x4xf32> to vector<8x4xf32>
    %cst_11 = arith.constant dense<0.000000e+00> : vector<8x256xf32>
    %19 = tpu.matmul %18, %16, %cst_11 {dimension_numbers = #tpu.dot_dimension_numbers<[1], [0], [0], [1], [0, 0, 1, 1], [], []>} : vector<8x4xf32>, vector<4x256xf32>, vector<8x256xf32> -> vector<8x256xf32>
    %20 = arith.addf %12, %19 : vector<8x256xf32>
    %c15_i32 = arith.constant 15 : i32
    %21 = tpu.dynamic_rotate %0 by %c15_i32 dim 1 : vector<4x256xf32>, i32 -> vector<4x256xf32>
    %22 = vector.extract_strided_slice %1 {offsets = [2, 0], sizes = [1, 256], strides = [1, 1]} : vector<9x256xf32> to vector<1x256xf32>
    %23 = vector.broadcast %22 : vector<1x256xf32> to vector<4x256xf32>
    %24 = arith.mulf %21, %23 : vector<4x256xf32>
    %c2 = arith.constant 2 : index
    %c0_12 = arith.constant 0 : index
    %c0_13 = arith.constant 0 : index
    %25 = vector.load %arg1[%c2, %c0_12, %c0_13] : memref<9x8x4xf32, #tpu.memory_space<vmem>>, vector<1x8x4xf32>
    %26 = vector.shape_cast %25 : vector<1x8x4xf32> to vector<8x4xf32>
    %cst_14 = arith.constant dense<0.000000e+00> : vector<8x256xf32>
    %27 = tpu.matmul %26, %24, %cst_14 {dimension_numbers = #tpu.dot_dimension_numbers<[1], [0], [0], [1], [0, 0, 1, 1], [], []>} : vector<8x4xf32>, vector<4x256xf32>, vector<8x256xf32> -> vector<8x256xf32>
    %28 = arith.addf %20, %27 : vector<8x256xf32>
    %c1_i32 = arith.constant 1 : i32
    %29 = tpu.dynamic_rotate %0 by %c1_i32 dim 1 : vector<4x256xf32>, i32 -> vector<4x256xf32>
    %30 = vector.extract_strided_slice %1 {offsets = [3, 0], sizes = [1, 256], strides = [1, 1]} : vector<9x256xf32> to vector<1x256xf32>
    %31 = vector.broadcast %30 : vector<1x256xf32> to vector<4x256xf32>
    %32 = arith.mulf %29, %31 : vector<4x256xf32>
    %c3 = arith.constant 3 : index
    %c0_15 = arith.constant 0 : index
    %c0_16 = arith.constant 0 : index
    %33 = vector.load %arg1[%c3, %c0_15, %c0_16] : memref<9x8x4xf32, #tpu.memory_space<vmem>>, vector<1x8x4xf32>
    %34 = vector.shape_cast %33 : vector<1x8x4xf32> to vector<8x4xf32>
    %cst_17 = arith.constant dense<0.000000e+00> : vector<8x256xf32>
    %35 = tpu.matmul %34, %32, %cst_17 {dimension_numbers = #tpu.dot_dimension_numbers<[1], [0], [0], [1], [0, 0, 1, 1], [], []>} : vector<8x4xf32>, vector<4x256xf32>, vector<8x256xf32> -> vector<8x256xf32>
    %36 = arith.addf %28, %35 : vector<8x256xf32>
    %c255_i32 = arith.constant 255 : i32
    %37 = tpu.dynamic_rotate %0 by %c255_i32 dim 1 : vector<4x256xf32>, i32 -> vector<4x256xf32>
    %38 = vector.extract_strided_slice %1 {offsets = [5, 0], sizes = [1, 256], strides = [1, 1]} : vector<9x256xf32> to vector<1x256xf32>
    %39 = vector.broadcast %38 : vector<1x256xf32> to vector<4x256xf32>
    %40 = arith.mulf %37, %39 : vector<4x256xf32>
    %c5 = arith.constant 5 : index
    %c0_18 = arith.constant 0 : index
    %c0_19 = arith.constant 0 : index
    %41 = vector.load %arg1[%c5, %c0_18, %c0_19] : memref<9x8x4xf32, #tpu.memory_space<vmem>>, vector<1x8x4xf32>
    %42 = vector.shape_cast %41 : vector<1x8x4xf32> to vector<8x4xf32>
    %cst_20 = arith.constant dense<0.000000e+00> : vector<8x256xf32>
    %43 = tpu.matmul %42, %40, %cst_20 {dimension_numbers = #tpu.dot_dimension_numbers<[1], [0], [0], [1], [0, 0, 1, 1], [], []>} : vector<8x4xf32>, vector<4x256xf32>, vector<8x256xf32> -> vector<8x256xf32>
    %44 = arith.addf %36, %43 : vector<8x256xf32>
    %c241_i32 = arith.constant 241 : i32
    %45 = tpu.dynamic_rotate %0 by %c241_i32 dim 1 : vector<4x256xf32>, i32 -> vector<4x256xf32>
    %46 = vector.extract_strided_slice %1 {offsets = [6, 0], sizes = [1, 256], strides = [1, 1]} : vector<9x256xf32> to vector<1x256xf32>
    %47 = vector.broadcast %46 : vector<1x256xf32> to vector<4x256xf32>
    %48 = arith.mulf %45, %47 : vector<4x256xf32>
    %c6 = arith.constant 6 : index
    %c0_21 = arith.constant 0 : index
    %c0_22 = arith.constant 0 : index
    %49 = vector.load %arg1[%c6, %c0_21, %c0_22] : memref<9x8x4xf32, #tpu.memory_space<vmem>>, vector<1x8x4xf32>
    %50 = vector.shape_cast %49 : vector<1x8x4xf32> to vector<8x4xf32>
    %cst_23 = arith.constant dense<0.000000e+00> : vector<8x256xf32>
    %51 = tpu.matmul %50, %48, %cst_23 {dimension_numbers = #tpu.dot_dimension_numbers<[1], [0], [0], [1], [0, 0, 1, 1], [], []>} : vector<8x4xf32>, vector<4x256xf32>, vector<8x256xf32> -> vector<8x256xf32>
    %52 = arith.addf %44, %51 : vector<8x256xf32>
    %c240_i32 = arith.constant 240 : i32
    %53 = tpu.dynamic_rotate %0 by %c240_i32 dim 1 : vector<4x256xf32>, i32 -> vector<4x256xf32>
    %54 = vector.extract_strided_slice %1 {offsets = [7, 0], sizes = [1, 256], strides = [1, 1]} : vector<9x256xf32> to vector<1x256xf32>
    %55 = vector.broadcast %54 : vector<1x256xf32> to vector<4x256xf32>
    %56 = arith.mulf %53, %55 : vector<4x256xf32>
    %c7 = arith.constant 7 : index
    %c0_24 = arith.constant 0 : index
    %c0_25 = arith.constant 0 : index
    %57 = vector.load %arg1[%c7, %c0_24, %c0_25] : memref<9x8x4xf32, #tpu.memory_space<vmem>>, vector<1x8x4xf32>
    %58 = vector.shape_cast %57 : vector<1x8x4xf32> to vector<8x4xf32>
    %cst_26 = arith.constant dense<0.000000e+00> : vector<8x256xf32>
    %59 = tpu.matmul %58, %56, %cst_26 {dimension_numbers = #tpu.dot_dimension_numbers<[1], [0], [0], [1], [0, 0, 1, 1], [], []>} : vector<8x4xf32>, vector<4x256xf32>, vector<8x256xf32> -> vector<8x256xf32>
    %60 = arith.addf %52, %59 : vector<8x256xf32>
    %c239_i32 = arith.constant 239 : i32
    %61 = tpu.dynamic_rotate %0 by %c239_i32 dim 1 : vector<4x256xf32>, i32 -> vector<4x256xf32>
    %62 = vector.extract_strided_slice %1 {offsets = [8, 0], sizes = [1, 256], strides = [1, 1]} : vector<9x256xf32> to vector<1x256xf32>
    %63 = vector.broadcast %62 : vector<1x256xf32> to vector<4x256xf32>
    %64 = arith.mulf %61, %63 : vector<4x256xf32>
    %c8 = arith.constant 8 : index
    %c0_27 = arith.constant 0 : index
    %c0_28 = arith.constant 0 : index
    %65 = vector.load %arg1[%c8, %c0_27, %c0_28] : memref<9x8x4xf32, #tpu.memory_space<vmem>>, vector<1x8x4xf32>
    %66 = vector.shape_cast %65 : vector<1x8x4xf32> to vector<8x4xf32>
    %cst_29 = arith.constant dense<0.000000e+00> : vector<8x256xf32>
    %67 = tpu.matmul %66, %64, %cst_29 {dimension_numbers = #tpu.dot_dimension_numbers<[1], [0], [0], [1], [0, 0, 1, 1], [], []>} : vector<8x4xf32>, vector<4x256xf32>, vector<8x256xf32> -> vector<8x256xf32>
    %68 = arith.addf %60, %67 : vector<8x256xf32>
    %c0_30 = arith.constant 0 : index
    %c0_31 = arith.constant 0 : index
    %69 = vector.load %arg2[%c0_30, %c0_31] : memref<8x2xf32, #tpu.memory_space<vmem>>, vector<8x1xf32>
    %c0_32 = arith.constant 0 : index
    %c1_33 = arith.constant 1 : index
    %70 = vector.load %arg2[%c0_32, %c1_33] : memref<8x2xf32, #tpu.memory_space<vmem>>, vector<8x1xf32>
    %cst_34 = arith.constant dense<0.000000e+00> : vector<8xf32>
    %71 = vector.multi_reduction <add>, %68, %cst_34 [1] : vector<8x256xf32> to vector<8xf32>
    %72 = vector.shape_cast %71 : vector<8xf32> to vector<8x1xf32>
    %cst_35 = arith.constant 2.560000e+02 : f32
    %73 = vector.broadcast %cst_35 : f32 to vector<8x1xf32>
    %74 = arith.divf %72, %73 : vector<8x1xf32>
    %75 = vector.broadcast %74 : vector<8x1xf32> to vector<8x256xf32>
    %76 = arith.subf %68, %75 : vector<8x256xf32>
    %77 = arith.mulf %76, %76 : vector<8x256xf32>
    %cst_36 = arith.constant dense<0.000000e+00> : vector<8xf32>
    %78 = vector.multi_reduction <add>, %77, %cst_36 [1] : vector<8x256xf32> to vector<8xf32>
    %79 = vector.shape_cast %78 : vector<8xf32> to vector<8x1xf32>
    %cst_37 = arith.constant 2.560000e+02 : f32
    %80 = vector.broadcast %cst_37 : f32 to vector<8x1xf32>
    %81 = arith.divf %79, %80 : vector<8x1xf32>
    %cst_38 = arith.constant 9.99999974E-6 : f32
    %82 = vector.broadcast %cst_38 : f32 to vector<8x1xf32>
    %83 = arith.addf %81, %82 : vector<8x1xf32>
    %84 = math.rsqrt %83 : vector<8x1xf32>
    %85 = arith.mulf %69, %84 : vector<8x1xf32>
    %86 = arith.mulf %74, %85 : vector<8x1xf32>
    %87 = arith.subf %70, %86 : vector<8x1xf32>
    %88 = vector.broadcast %85 : vector<8x1xf32> to vector<8x256xf32>
    %89 = arith.mulf %68, %88 : vector<8x256xf32>
    %90 = vector.broadcast %87 : vector<8x1xf32> to vector<8x256xf32>
    %91 = arith.addf %89, %90 : vector<8x256xf32>
    %cst_39 = arith.constant 0.000000e+00 : f32
    %92 = vector.broadcast %cst_39 : f32 to vector<8x256xf32>
    %93 = arith.maximumf %91, %92 : vector<8x256xf32>
    %c0_40 = arith.constant 0 : index
    %c0_41 = arith.constant 0 : index
    %94 = vector.load %arg5[%c0_40, %c0_41] : memref<8x256xf32, #tpu.memory_space<vmem>>, vector<8x256xf32>
    tpu.vector_store %arg5[%c0_40, %c0_41], %93 {strides = array<i32>} : memref<8x256xf32, #tpu.memory_space<vmem>>, vector<8x256xf32>,
    return
  }
  func.func @transform_0(%arg0: i32) -> (i32, i32, i32) {
    %c0_i32 = arith.constant 0 : i32
    %c0_i32_0 = arith.constant 0 : i32
    %c0_i32_1 = arith.constant 0 : i32
    %c0_i32_2 = arith.constant 0 : i32
    return %c0_i32, %c0_i32_0, %c0_i32_1 : i32, i32, i32
  }
  func.func @transform_1(%arg0: i32) -> (i32, i32) {
    %c0_i32 = arith.constant 0 : i32
    %c0_i32_0 = arith.constant 0 : i32
    %c0_i32_1 = arith.constant 0 : i32
    return %c0_i32, %c0_i32_0 : i32, i32
  }
  func.func @transform_2(%arg0: i32) -> (i32, i32) {
    %c0_i32 = arith.constant 0 : i32
    %c0_i32_0 = arith.constant 0 : i32
    %c0_i32_1 = arith.constant 0 : i32
    return %c0_i32, %c0_i32_0 : i32, i32
  }
  func.func @transform_3(%arg0: i32) -> (i32, i32) {
    %c0_i32 = arith.constant 0 : i32
    %c0_i32_0 = arith.constant 0 : i32
    return %c0_i32, %arg0 : i32, i32
  }
  func.func @transform_4(%arg0: i32) -> (i32, i32) {
    %c0_i32 = arith.constant 0 : i32
    %c0_i32_0 = arith.constant 0 : i32
    return %c0_i32, %arg0 : i32, i32
  }
}

</mosaic_0001>

<llo_original>
// kernel: tpu_custom_call.1
$region0: #{tpu_custom_call.1}
  #allocation0 [shape = 'u32[]', space=smem, size = 0x4, offset = 0x4, fixed_abs, tag = 'smem constant byte address 0x4 - core index']
  #allocation1 [shape = 'u32[144,128]{1,0:T(1,128)}', space=vmem, size = 0x12000, scoped, tag = 'internal scratch']
  %s0 = inlined_call_operand.vmem [shape: f32[9,8,4], index: 0, kind: input, shape index: {}]
  %s1 = inlined_call_operand.vmem [shape: f32[8,2], index: 1, kind: input, shape index: {}]
  %s2 = inlined_call_operand.vmem [shape: f32[9,256], index: 2, kind: input, shape index: {}]
  %s3 = inlined_call_operand.vmem [shape: f32[4,512], index: 3, kind: input, shape index: {}]
  %s4 = inlined_call_operand.hbm [shape: f32[8,512], index: 4, kind: output, shape index: {}]
  %s5 = sld [smem:[#allocation0]]
  $region49: #{tpu_custom_call.1} parent=0
    _
  %s7 = ssub.s32 1, %s5
  %s8 = scalar_select 0, %s7, %s5
  $region1: #{tpu_custom_call.1} parent=0
    #allocation2 [shape = 'u8[16384]{0}', space=vmem, size = 0x4000, scoped, tag = 'output window, operand 0']
    #allocation3 [shape = 's32[2]{0}', space=sflag, size = 0x8, scoped, tag = 'scoped memory for tpu_custom_call.1']
    %9 = vsyncpa [#allocation3], 0
    %s10 = scalar_lea.sflag [#allocation3], 1
    %11 = vsyncpa %s10, 0
    loop: start=0, step=1, limit=4
    $region2: #{tpu_custom_call.1} parent=1 // loop_pre_header
      _
    $region3: #{tpu_custom_call.1} parent=1 // loop_header
      %s13 = sphi 0, %s17
      %p14 = scmp.ge.s32.totalorder %s13, 4
      %s21 = sphi 0, %s21
      %s23 = sphi 0, %s21
      %s24 = sphi 0, %s23
      %s38 = sphi 0, %s24
      %s42 = sphi 0, %s42
      %s44 = sphi 0, %s42
      %s45 = sphi 0, %s44
      %s59 = sphi 0, %s45
      %s63 = sphi 0, %s63
      %s65 = sphi 0, %s63
      %s66 = sphi 0, %s65
      %s80 = sphi 0, %s66
      %s86 = sphi 0, %s88
      %s89 = sphi 0, %s86
      %s90 = sphi 0, %s89
      %s106 = sphi 0, %s90
      %s112 = sphi 0, %s114
      %s115 = sphi 0, %s112
      %s116 = sphi 0, %s115
      %s132 = sphi 0, %s116
    $region4: #{tpu_custom_call.1} parent=1 // loop_header_branch
      %16 = sbr.rel (%p14) target = $region8
    $region5: #{tpu_custom_call.1} parent=1 // loop_body
      %s18 = ssub.s32 %s13, 1
      %s19 = ssub.s32 %s13, 2
      %s20 = sadd.s32 %s13, 1
      %s22 = sadd.s32 %s21, 1
      %p25 = scmp.eq.s32.totalorder %s13, 1
      %p26 = scmp.ne.s32.totalorder %s21, %s23
      %p27 = scmp.eq.s32.totalorder %s13, 0
      %p28 = por %p26, %p27
      %p29 = scmp.ne.s32.totalorder %s21, %s23
      %p30 = scmp.eq.s32.totalorder %s18, 1
      %p31 = por %p29, %p30
      %p32 = scmp.ne.s32.totalorder %s23, %s24
      %p33 = scmp.eq.s32.totalorder %s18, 0
      %p34 = por %p32, %p33
      %p35 = scmp.ne.s32.totalorder %s23, %s24
      %p36 = scmp.eq.s32.totalorder %s19, 1
      %p37 = por %p35, %p36
      %p39 = scmp.ne.s32.totalorder %s24, %s38
      %p40 = scmp.eq.s32.totalorder %s19, 0
      %p41 = por %p39, %p40
      %s43 = sadd.s32 %s42, 1
      %p46 = scmp.eq.s32.totalorder %s13, 1
      %p47 = scmp.ne.s32.totalorder %s42, %s44
      %p48 = scmp.eq.s32.totalorder %s13, 0
      %p49 = por %p47, %p48
      %p50 = scmp.ne.s32.totalorder %s42, %s44
      %p51 = scmp.eq.s32.totalorder %s18, 1
      %p52 = por %p50, %p51
      %p53 = scmp.ne.s32.totalorder %s44, %s45
      %p54 = scmp.eq.s32.totalorder %s18, 0
      %p55 = por %p53, %p54
      %p56 = scmp.ne.s32.totalorder %s44, %s45
      %p57 = scmp.eq.s32.totalorder %s19, 1
      %p58 = por %p56, %p57
      %p60 = scmp.ne.s32.totalorder %s45, %s59
      %p61 = scmp.eq.s32.totalorder %s19, 0
      %p62 = por %p60, %p61
      %s64 = sadd.s32 %s63, 1
      %p67 = scmp.eq.s32.totalorder %s13, 1
      %p68 = scmp.ne.s32.totalorder %s63, %s65
      %p69 = scmp.eq.s32.totalorder %s13, 0
      %p70 = por %p68, %p69
      %p71 = scmp.ne.s32.totalorder %s63, %s65
      %p72 = scmp.eq.s32.totalorder %s18, 1
      %p73 = por %p71, %p72
      %p74 = scmp.ne.s32.totalorder %s65, %s66
      %p75 = scmp.eq.s32.totalorder %s18, 0
      %p76 = por %p74, %p75
      %p77 = scmp.ne.s32.totalorder %s65, %s66
      %p78 = scmp.eq.s32.totalorder %s19, 1
      %p79 = por %p77, %p78
      %p81 = scmp.ne.s32.totalorder %s66, %s80
      %p82 = scmp.eq.s32.totalorder %s19, 0
      %p83 = por %p81, %p82
      %s84 = ssub.s32 %s13, %s20
      %p85 = scmp.eq.s32.totalorder %s84, 0
      %s87 = sadd.s32 %s86, 1
      %s88 = scalar_select %p85, %s86, %s87
      %p91 = pneg %p85
      %p92 = scmp.eq.s32.totalorder %s13, 1
      %p93 = por %p91, %p92
      %p94 = scmp.ne.s32.totalorder %s86, %s89
      %p95 = scmp.eq.s32.totalorder %s13, 0
      %p96 = por %p94, %p95
      %p97 = scmp.ne.s32.totalorder %s86, %s89
      %p98 = scmp.eq.s32.totalorder %s18, 1
      %p99 = por %p97, %p98
      %p100 = scmp.ne.s32.totalorder %s89, %s90
      %p101 = scmp.eq.s32.totalorder %s18, 0
      %p102 = por %p100, %p101
      %p103 = scmp.ne.s32.totalorder %s89, %s90
      %p104 = scmp.eq.s32.totalorder %s19, 1
      %p105 = por %p103, %p104
      %p107 = scmp.ne.s32.totalorder %s90, %s106
      %p108 = scmp.eq.s32.totalorder %s19, 0
      %p109 = por %p107, %p108
      %s110 = ssub.s32 %s13, %s20
      %p111 = scmp.eq.s32.totalorder %s110, 0
      %s113 = sadd.s32 %s112, 1
      %s114 = scalar_select %p111, %s112, %s113
      %p117 = pneg %p111
      %p118 = scmp.eq.s32.totalorder %s13, 1
      %p119 = por %p117, %p118
      %p120 = scmp.ne.s32.totalorder %s112, %s115
      %p121 = scmp.eq.s32.totalorder %s13, 0
      %p122 = por %p120, %p121
      %p123 = scmp.ne.s32.totalorder %s112, %s115
      %p124 = scmp.eq.s32.totalorder %s18, 1
      %p125 = por %p123, %p124
      %p126 = scmp.ne.s32.totalorder %s115, %s116
      %p127 = scmp.eq.s32.totalorder %s18, 0
      %p128 = por %p126, %p127
      %p129 = scmp.ne.s32.totalorder %s115, %s116
      %p130 = scmp.eq.s32.totalorder %s19, 1
      %p131 = por %p129, %p130
      %p133 = scmp.ne.s32.totalorder %s116, %s132
      %p134 = scmp.eq.s32.totalorder %s19, 0
      %p135 = por %p133, %p134
      %p136 = scmp.le.s32.totalorder 1, %s13
      %p137 = scmp.lt.s32.totalorder %s13, 3
      %p138 = pnand %p136, %p137
      %p139 = pneg %p138
      // Predicated region
      $region9: #{tpu_custom_call.1} parent=5 // pred_check
        _
      $region10: #{tpu_custom_call.1} parent=5 // pred_check_branch
        %141 = sbr.rel (%p138) target = $region12
      $region11: #{tpu_custom_call.1} parent=5 // pred_region
        %s142 = ssub.s32 %s13, 1
        // Predicated region
        $region13: #{tpu_custom_call.1} parent=11 // pred_check
          %p143 = pneg %p34
        $region14: #{tpu_custom_call.1} parent=11 // pred_check_branch
          %145 = sbr.rel (%p143) target = $region16
        $region15: #{tpu_custom_call.1} parent=11 // pred_region
          _
        $region16: #{tpu_custom_call.1} parent=11 // pred_fallthru
          _
        // Predicated region
        $region17: #{tpu_custom_call.1} parent=11 // pred_check
          %p146 = pneg %p55
        $region18: #{tpu_custom_call.1} parent=11 // pred_check_branch
          %148 = sbr.rel (%p146) target = $region20
        $region19: #{tpu_custom_call.1} parent=11 // pred_region
          _
        $region20: #{tpu_custom_call.1} parent=11 // pred_fallthru
          _
        // Predicated region
        $region21: #{tpu_custom_call.1} parent=11 // pred_check
          %p149 = pneg %p76
        $region22: #{tpu_custom_call.1} parent=11 // pred_check_branch
          %151 = sbr.rel (%p149) target = $region24
        $region23: #{tpu_custom_call.1} parent=11 // pred_region
          _
        $region24: #{tpu_custom_call.1} parent=11 // pred_fallthru
          _
      $region12: #{tpu_custom_call.1} parent=5 // pred_fallthru
        _
      %p152 = scmp.lt.s32.totalorder %s13, 2
      // Predicated region
      $region25: #{tpu_custom_call.1} parent=5 // pred_check
        %p153 = pneg %p152
      $region26: #{tpu_custom_call.1} parent=5 // pred_check_branch
        %155 = sbr.rel (%p153) target = $region28
      $region27: #{tpu_custom_call.1} parent=5 // pred_region
        // Predicated region
        $region29: #{tpu_custom_call.1} parent=27 // pred_check
          %p156 = pneg %p96
        $region30: #{tpu_custom_call.1} parent=27 // pred_check_branch
          %158 = sbr.rel (%p156) target = $region32
        $region31: #{tpu_custom_call.1} parent=27 // pred_region
          %s159 = smul.u32 2, %s13
          %p160 = scmp.lt.s32.totalorder %s159, 3
          %s161 = scalar_select %p160, %s159, 3
          %s162 = smul.addr %s161, 4
          %s163 = scalar_lea.vmem %s3, %s162
          %s164 = smul.u32 2, %s13
        $region32: #{tpu_custom_call.1} parent=27 // pred_fallthru
          _
      $region28: #{tpu_custom_call.1} parent=5 // pred_fallthru
        _
      %p165 = scmp.le.s32.totalorder 1, %s13
      %p166 = scmp.lt.s32.totalorder %s13, 3
      %p167 = pnand %p165, %p166
      %p168 = pneg %p167
      // Predicated region
      $region33: #{tpu_custom_call.1} parent=5 // pred_check
        _
      $region34: #{tpu_custom_call.1} parent=5 // pred_check_branch
        %170 = sbr.rel (%p167) target = $region36
      $region35: #{tpu_custom_call.1} parent=5 // pred_region
        %s171 = ssub.s32 %s13, 1
        %p172 = pneg %p34
        %p173 = pneg %p31
        %p174 = pneg %p55
        %p175 = pneg %p52
        %p176 = pneg %p76
        %p177 = pneg %p73
        %s178 = smul.u32 2, %s18
        %p179 = scmp.lt.s32.totalorder %s178, 3
        %s180 = scalar_select %p179, %s178, 3
        %s181 = smul.addr %s180, 4
        %s182 = scalar_lea.vmem %s3, %s181
        %p183 = pneg %p102
        %p184 = pneg %p99
        %p185 = pneg %p128
        %p186 = pneg %p125
        %s187 = sand.u32 %s115, 1
        %s188 = scalar_lea.sflag [#allocation3], %s187
        %s189 = sand.u32 %s115, 1
        %s190 = smul.addr %s189, 16
        %s191 = scalar_lea.vmem [#allocation2], %s190
        %s192 = smul.u32 2, %s18
        %p193 = scmp.lt.s32.totalorder %s192, 3
        %s194 = scalar_select %p193, %s192, 3
        %s195 = smul.addr %s194, 4
        %s196 = scalar_lea.vmem %s3, %s195
        %s197 = smul.u32 2, %s18
        %s198 = smul.u32 2, %s18
        %v199 = vld [vmem:[%s196] sm:$0xff]
        %v200 = vld [vmem:[%s2] sm:$0xff]
        %v201 = vld [vmem:[%s2 + $0x8] sm:$0xff]
        %v202 = vld [vmem:[%s2 + $0x10] sm:$0x1]
        %v203 = vld [vmem:[%s2 + $0x18] sm:$0x1]
        %s204 = scalar_lea.vmem %s0, 32
        %v205 = vld [vmem:[%s204] sm:$0xff]
        %v207 = vcombine.high %v199, %v199
        %209 = vrot.lane.b32.xlu0 %v199, 17
        %v210 = vpop.permute.xlu0 %209
        %211 = vrot.lane.b32.xlu0 %v207, 17
        %v212 = vpop.permute.xlu0 %211
        %v213 = vlaneseq
        %v214 = vand.u32 %v213, 127
        %vm215 = vcmp.lt.s32.totalorder %v214, 17
        %v216 = vsel %vm215, %v210, %v212
        %v217 = vsel %vm215, %v212, %v210
        %v218 = vlaneseq
        %v219 = vshrl.u32 %v218, 7
        %v220 = vsub.s32 0, %v219
        %v221 = vrot.slane %v200, %v220
        %v222 = vlaneseq
        %v223 = vshrl.u32 %v222, 7
        %v224 = vsub.s32 0, %v223
        %v225 = vrot.slane %v201, %v224
        %v226 = vmul.f32 %v217, %v221
        %v227 = vmul.f32 %v216, %v225
        %v228 = vld [vmem:[%s0] sm:$0xff]
        %vm229 = vcmask 31744
        %v231 = vsel %vm229, %v228, 0
        %vm233 = vcmask 1043456
        %v235 = vsel %vm233, %v226, 0
        %v238 = vsel %vm233, %v227, 0
        %240 = vmatprep.subr.mxu0 %v238
        %241 = vmatpush1.msra.mxu0 %v235
        %242 = vmatprep.subr.mxu0 0.0
        %243 = vmatpush1.msra.mxu0 0.0
        %244 = vmatprep.subr.mxu0 0.0
        %245 = vmatpush1.msra.mxu0 0.0
        %246 = vmatprep.subr.mxu0 0.0
        %247 = vmatpush1.msra.mxu0 0.0
        %248 = vmatprep.subr.mxu0 0.0
        %249 = vmatpush1.msra.mxu0 0.0
        %250 = vmatprep.subr.mxu0 0.0
        %251 = vmatpush1.msra.mxu0 0.0
        %252 = vmatprep.subr.mxu0 0.0
        %253 = vmatpush1.msra.mxu0 0.0
        %254 = vmatprep.subr.mxu0 0.0
        %255 = vmatpush1.msra.mxu0 0.0
        %256 = vmatprep.subr.mxu0 0.0
        %257 = vmatpush1.msra.mxu0 0.0
        %258 = vmatprep.subr.mxu0 0.0
        %259 = vmatpush1.msra.mxu0 0.0
        %260 = vmatprep.subr.mxu0 0.0
        %261 = vmatpush1.msra.mxu0 0.0
        %262 = vmatprep.subr.mxu0 0.0
        %263 = vmatpush1.msra.mxu0 0.0
        %264 = vmatprep.subr.mxu0 0.0
        %265 = vmatpush1.msra.mxu0 0.0
        %266 = vmatprep.subr.mxu0 0.0
        %267 = vmatpush1.msra.mxu0 0.0
        %268 = vmatprep.subr.mxu0 0.0
        %269 = vmatpush1.msra.mxu0 0.0
        %270 = vmatprep.subr.mxu0 0.0
        %271 = vmatpush1.msra.mxu0 0.0
        %272 = vmatprep.subr.mxu0 0.0
        %273 = vmatpush1.msra.mxu0 0.0
        %274 = vmatprep.subr.mxu0 0.0
        %275 = vmatpush1.msra.mxu0 0.0
        %276 = vmatprep.subr.mxu0 0.0
        %277 = vmatpush1.msra.mxu0 0.0
        %278 = vmatprep.subr.mxu0 0.0
        %279 = vmatpush1.msra.mxu0 0.0
        %280 = vmatprep.subr.mxu0 0.0
        %281 = vmatpush1.msra.mxu0 0.0
        %282 = vmatprep.subr.mxu0 0.0
        %283 = vmatpush1.msra.mxu0 0.0
        %284 = vmatprep.subr.mxu0 0.0
        %285 = vmatpush1.msra.mxu0 0.0
        %286 = vmatprep.subr.mxu0 0.0
        %287 = vmatpush1.msra.mxu0 0.0
        %288 = vmatprep.subr.mxu0 0.0
        %289 = vmatpush1.msra.mxu0 0.0
        %290 = vmatprep.subr.mxu0 0.0
        %291 = vmatpush1.msra.mxu0 0.0
        %292 = vmatprep.subr.mxu0 0.0
        %293 = vmatpush1.msra.mxu0 0.0
        %294 = vmatprep.subr.mxu0 0.0
        %295 = vmatpush1.msra.mxu0 0.0
        %296 = vmatprep.subr.mxu0 0.0
        %297 = vmatpush1.msra.mxu0 0.0
        %298 = vmatprep.subr.mxu0 0.0
        %299 = vmatpush1.msra.mxu0 0.0
        %300 = vmatprep.subr.mxu0 0.0
        %301 = vmatpush1.msra.mxu0 0.0
        %302 = vmatprep.subr.mxu0 0.0
        %303 = vmatpush1.msra.mxu0 0.0
        %304 = vmatprep.mubr.f32.mxu0 0.0
        %305 = vmatmul.mubr.f32.gmra.mrb[0].mxu0 %v231
        %v306 = vpop.f32.mrb[0].mxu0
        %v307 = vadd.f32 0.0, %v306
        %v308 = vpop.f32.mrb[0].mxu0
        %v309 = vadd.f32 0.0, %v308
        %310 = vdwg.mxu0
        %v312 = vsel %vm229, %v205, 0
        %v314 = vsel %vm233, %v199, 0
        %v316 = vsel %vm233, %v207, 0
        %318 = vmatprep.subr.mxu0 %v316
        %319 = vmatpush1.msra.mxu0 %v314
        %320 = vmatprep.subr.mxu0 0.0
        %321 = vmatpush1.msra.mxu0 0.0
        %322 = vmatprep.subr.mxu0 0.0
        %323 = vmatpush1.msra.mxu0 0.0
        %324 = vmatprep.subr.mxu0 0.0
        %325 = vmatpush1.msra.mxu0 0.0
        %326 = vmatprep.subr.mxu0 0.0
        %327 = vmatpush1.msra.mxu0 0.0
        %328 = vmatprep.subr.mxu0 0.0
        %329 = vmatpush1.msra.mxu0 0.0
        %330 = vmatprep.subr.mxu0 0.0
        %331 = vmatpush1.msra.mxu0 0.0
        %332 = vmatprep.subr.mxu0 0.0
        %333 = vmatpush1.msra.mxu0 0.0
        %334 = vmatprep.subr.mxu0 0.0
        %335 = vmatpush1.msra.mxu0 0.0
        %336 = vmatprep.subr.mxu0 0.0
        %337 = vmatpush1.msra.mxu0 0.0
        %338 = vmatprep.subr.mxu0 0.0
        %339 = vmatpush1.msra.mxu0 0.0
        %340 = vmatprep.subr.mxu0 0.0
        %341 = vmatpush1.msra.mxu0 0.0
        %342 = vmatprep.subr.mxu0 0.0
        %343 = vmatpush1.msra.mxu0 0.0
        %344 = vmatprep.subr.mxu0 0.0
        %345 = vmatpush1.msra.mxu0 0.0
        %346 = vmatprep.subr.mxu0 0.0
        %347 = vmatpush1.msra.mxu0 0.0
        %348 = vmatprep.subr.mxu0 0.0
        %349 = vmatpush1.msra.mxu0 0.0
        %350 = vmatprep.subr.mxu0 0.0
        %351 = vmatpush1.msra.mxu0 0.0
        %352 = vmatprep.subr.mxu0 0.0
        %353 = vmatpush1.msra.mxu0 0.0
        %354 = vmatprep.subr.mxu0 0.0
        %355 = vmatpush1.msra.mxu0 0.0
        %356 = vmatprep.subr.mxu0 0.0
        %357 = vmatpush1.msra.mxu0 0.0
        %358 = vmatprep.subr.mxu0 0.0
        %359 = vmatpush1.msra.mxu0 0.0
        %360 = vmatprep.subr.mxu0 0.0
        %361 = vmatpush1.msra.mxu0 0.0
        %362 = vmatprep.subr.mxu0 0.0
        %363 = vmatpush1.msra.mxu0 0.0
        %364 = vmatprep.subr.mxu0 0.0
        %365 = vmatpush1.msra.mxu0 0.0
        %366 = vmatprep.subr.mxu0 0.0
        %367 = vmatpush1.msra.mxu0 0.0
        %368 = vmatprep.subr.mxu0 0.0
        %369 = vmatpush1.msra.mxu0 0.0
        %370 = vmatprep.subr.mxu0 0.0
        %371 = vmatpush1.msra.mxu0 0.0
        %372 = vmatprep.subr.mxu0 0.0
        %373 = vmatpush1.msra.mxu0 0.0
        %374 = vmatprep.subr.mxu0 0.0
        %375 = vmatpush1.msra.mxu0 0.0
        %376 = vmatprep.subr.mxu0 0.0
        %377 = vmatpush1.msra.mxu0 0.0
        %378 = vmatprep.subr.mxu0 0.0
        %379 = vmatpush1.msra.mxu0 0.0
        %380 = vmatprep.subr.mxu0 0.0
        %381 = vmatpush1.msra.mxu0 0.0
        %382 = vmatprep.mubr.f32.mxu0 0.0
        %383 = vmatmul.mubr.f32.gmra.mrb[0].mxu0 %v312
        %v384 = vpop.f32.mrb[0].mxu0
        %v385 = vadd.f32 %v307, %v384
        %v386 = vpop.f32.mrb[0].mxu0
        %v387 = vadd.f32 %v309, %v386
        %388 = vdwg.mxu0
        %389 = vrot.lane.b32.xlu0 %v199, 16
        %v390 = vpop.permute.xlu0 %389
        %391 = vrot.lane.b32.xlu0 %v207, 16
        %v392 = vpop.permute.xlu0 %391
        %vm393 = vcmp.lt.s32.totalorder %v214, 16
        %v394 = vsel %vm393, %v390, %v392
        %v395 = vsel %vm393, %v392, %v390
        %v396 = vlaneseq
        %v397 = vshrl.u32 %v396, 7
        %v398 = vsub.s32 1, %v397
        %v399 = vrot.slane %v200, %v398
        %v400 = vlaneseq
        %v401 = vshrl.u32 %v400, 7
        %v402 = vsub.s32 1, %v401
        %v403 = vrot.slane %v201, %v402
        %v404 = vmul.f32 %v395, %v399
        %v405 = vmul.f32 %v394, %v403
        %s406 = scalar_lea.vmem %s0, 8
        %v407 = vld [vmem:[%s406] sm:$0xff]
        %v409 = vsel %vm229, %v407, 0
        %v412 = vsel %vm233, %v404, 0
        %v415 = vsel %vm233, %v405, 0
        %417 = vmatprep.subr.mxu0 %v415
        %418 = vmatpush1.msra.mxu0 %v412
        %419 = vmatprep.subr.mxu0 0.0
        %420 = vmatpush1.msra.mxu0 0.0
        %421 = vmatprep.subr.mxu0 0.0
        %422 = vmatpush1.msra.mxu0 0.0
        %423 = vmatprep.subr.mxu0 0.0
        %424 = vmatpush1.msra.mxu0 0.0
        %425 = vmatprep.subr.mxu0 0.0
        %426 = vmatpush1.msra.mxu0 0.0
        %427 = vmatprep.subr.mxu0 0.0
        %428 = vmatpush1.msra.mxu0 0.0
        %429 = vmatprep.subr.mxu0 0.0
        %430 = vmatpush1.msra.mxu0 0.0
        %431 = vmatprep.subr.mxu0 0.0
        %432 = vmatpush1.msra.mxu0 0.0
        %433 = vmatprep.subr.mxu0 0.0
        %434 = vmatpush1.msra.mxu0 0.0
        %435 = vmatprep.subr.mxu0 0.0
        %436 = vmatpush1.msra.mxu0 0.0
        %437 = vmatprep.subr.mxu0 0.0
        %438 = vmatpush1.msra.mxu0 0.0
        %439 = vmatprep.subr.mxu0 0.0
        %440 = vmatpush1.msra.mxu0 0.0
        %441 = vmatprep.subr.mxu0 0.0
        %442 = vmatpush1.msra.mxu0 0.0
        %443 = vmatprep.subr.mxu0 0.0
        %444 = vmatpush1.msra.mxu0 0.0
        %445 = vmatprep.subr.mxu0 0.0
        %446 = vmatpush1.msra.mxu0 0.0
        %447 = vmatprep.subr.mxu0 0.0
        %448 = vmatpush1.msra.mxu0 0.0
        %449 = vmatprep.subr.mxu0 0.0
        %450 = vmatpush1.msra.mxu0 0.0
        %451 = vmatprep.subr.mxu0 0.0
        %452 = vmatpush1.msra.mxu0 0.0
        %453 = vmatprep.subr.mxu0 0.0
        %454 = vmatpush1.msra.mxu0 0.0
        %455 = vmatprep.subr.mxu0 0.0
        %456 = vmatpush1.msra.mxu0 0.0
        %457 = vmatprep.subr.mxu0 0.0
        %458 = vmatpush1.msra.mxu0 0.0
        %459 = vmatprep.subr.mxu0 0.0
        %460 = vmatpush1.msra.mxu0 0.0
        %461 = vmatprep.subr.mxu0 0.0
        %462 = vmatpush1.msra.mxu0 0.0
        %463 = vmatprep.subr.mxu0 0.0
        %464 = vmatpush1.msra.mxu0 0.0
        %465 = vmatprep.subr.mxu0 0.0
        %466 = vmatpush1.msra.mxu0 0.0
        %467 = vmatprep.subr.mxu0 0.0
        %468 = vmatpush1.msra.mxu0 0.0
        %469 = vmatprep.subr.mxu0 0.0
        %470 = vmatpush1.msra.mxu0 0.0
        %471 = vmatprep.subr.mxu0 0.0
        %472 = vmatpush1.msra.mxu0 0.0
        %473 = vmatprep.subr.mxu0 0.0
        %474 = vmatpush1.msra.mxu0 0.0
        %475 = vmatprep.subr.mxu0 0.0
        %476 = vmatpush1.msra.mxu0 0.0
        %477 = vmatprep.subr.mxu0 0.0
        %478 = vmatpush1.msra.mxu0 0.0
        %479 = vmatprep.subr.mxu0 0.0
        %480 = vmatpush1.msra.mxu0 0.0
        %481 = vmatprep.mubr.f32.mxu0 0.0
        %482 = vmatmul.mubr.f32.gmra.mrb[0].mxu0 %v409
        %v483 = vpop.f32.mrb[0].mxu0
        %v484 = vadd.f32 0.0, %v483
        %v485 = vpop.f32.mrb[0].mxu0
        %v486 = vadd.f32 0.0, %v485
        %487 = vdwg.mxu0
        %v488 = vadd.f32 %v385, %v484
        %v489 = vadd.f32 %v387, %v486
        %490 = vrot.lane.b32.xlu0 %v199, 15
        %v491 = vpop.permute.xlu0 %490
        %492 = vrot.lane.b32.xlu0 %v207, 15
        %v493 = vpop.permute.xlu0 %492
        %vm494 = vcmp.lt.s32.totalorder %v214, 15
        %v495 = vsel %vm494, %v491, %v493
        %v496 = vsel %vm494, %v493, %v491
        %v497 = vlaneseq
        %v498 = vshrl.u32 %v497, 7
        %v499 = vsub.s32 2, %v498
        %v500 = vrot.slane %v200, %v499
        %v501 = vlaneseq
        %v502 = vshrl.u32 %v501, 7
        %v503 = vsub.s32 2, %v502
        %v504 = vrot.slane %v201, %v503
        %v505 = vmul.f32 %v496, %v500
        %v506 = vmul.f32 %v495, %v504
        %s507 = scalar_lea.vmem %s0, 16
        %v508 = vld [vmem:[%s507] sm:$0xff]
        %v510 = vsel %vm229, %v508, 0
        %v513 = vsel %vm233, %v505, 0
        %v516 = vsel %vm233, %v506, 0
        %518 = vmatprep.subr.mxu0 %v516
        %519 = vmatpush1.msra.mxu0 %v513
        %520 = vmatprep.subr.mxu0 0.0
        %521 = vmatpush1.msra.mxu0 0.0
        %522 = vmatprep.subr.mxu0 0.0
        %523 = vmatpush1.msra.mxu0 0.0
        %524 = vmatprep.subr.mxu0 0.0
        %525 = vmatpush1.msra.mxu0 0.0
        %526 = vmatprep.subr.mxu0 0.0
        %527 = vmatpush1.msra.mxu0 0.0
        %528 = vmatprep.subr.mxu0 0.0
        %529 = vmatpush1.msra.mxu0 0.0
        %530 = vmatprep.subr.mxu0 0.0
        %531 = vmatpush1.msra.mxu0 0.0
        %532 = vmatprep.subr.mxu0 0.0
        %533 = vmatpush1.msra.mxu0 0.0
        %534 = vmatprep.subr.mxu0 0.0
        %535 = vmatpush1.msra.mxu0 0.0
        %536 = vmatprep.subr.mxu0 0.0
        %537 = vmatpush1.msra.mxu0 0.0
        %538 = vmatprep.subr.mxu0 0.0
        %539 = vmatpush1.msra.mxu0 0.0
        %540 = vmatprep.subr.mxu0 0.0
        %541 = vmatpush1.msra.mxu0 0.0
        %542 = vmatprep.subr.mxu0 0.0
        %543 = vmatpush1.msra.mxu0 0.0
        %544 = vmatprep.subr.mxu0 0.0
        %545 = vmatpush1.msra.mxu0 0.0
        %546 = vmatprep.subr.mxu0 0.0
        %547 = vmatpush1.msra.mxu0 0.0
        %548 = vmatprep.subr.mxu0 0.0
        %549 = vmatpush1.msra.mxu0 0.0
        %550 = vmatprep.subr.mxu0 0.0
        %551 = vmatpush1.msra.mxu0 0.0
        %552 = vmatprep.subr.mxu0 0.0
        %553 = vmatpush1.msra.mxu0 0.0
        %554 = vmatprep.subr.mxu0 0.0
        %555 = vmatpush1.msra.mxu0 0.0
        %556 = vmatprep.subr.mxu0 0.0
        %557 = vmatpush1.msra.mxu0 0.0
        %558 = vmatprep.subr.mxu0 0.0
        %559 = vmatpush1.msra.mxu0 0.0
        %560 = vmatprep.subr.mxu0 0.0
        %561 = vmatpush1.msra.mxu0 0.0
        %562 = vmatprep.subr.mxu0 0.0
        %563 = vmatpush1.msra.mxu0 0.0
        %564 = vmatprep.subr.mxu0 0.0
        %565 = vmatpush1.msra.mxu0 0.0
        %566 = vmatprep.subr.mxu0 0.0
        %567 = vmatpush1.msra.mxu0 0.0
        %568 = vmatprep.subr.mxu0 0.0
        %569 = vmatpush1.msra.mxu0 0.0
        %570 = vmatprep.subr.mxu0 0.0
        %571 = vmatpush1.msra.mxu0 0.0
        %572 = vmatprep.subr.mxu0 0.0
        %573 = vmatpush1.msra.mxu0 0.0
        %574 = vmatprep.subr.mxu0 0.0
        %575 = vmatpush1.msra.mxu0 0.0
        %576 = vmatprep.subr.mxu0 0.0
        %577 = vmatpush1.msra.mxu0 0.0
        %578 = vmatprep.subr.mxu0 0.0
        %579 = vmatpush1.msra.mxu0 0.0
        %580 = vmatprep.subr.mxu0 0.0
        %581 = vmatpush1.msra.mxu0 0.0
        %582 = vmatprep.mubr.f32.mxu0 0.0
        %583 = vmatmul.mubr.f32.gmra.mrb[0].mxu0 %v510
        %v584 = vpop.f32.mrb[0].mxu0
        %v585 = vadd.f32 0.0, %v584
        %v586 = vpop.f32.mrb[0].mxu0
        %v587 = vadd.f32 0.0, %v586
        %588 = vdwg.mxu0
        %v589 = vadd.f32 %v488, %v585
        %v590 = vadd.f32 %v489, %v587
        %591 = vrot.lane.b32.xlu0 %v199, 1
        %v592 = vpop.permute.xlu0 %591
        %593 = vrot.lane.b32.xlu0 %v207, 1
        %v594 = vpop.permute.xlu0 %593
        %vm595 = vcmp.lt.s32.totalorder %v214, 1
        %v596 = vsel %vm595, %v592, %v594
        %v597 = vsel %vm595, %v594, %v592
        %v598 = vlaneseq
        %v599 = vshrl.u32 %v598, 7
        %v600 = vsub.s32 3, %v599
        %v601 = vrot.slane %v200, %v600
        %v602 = vlaneseq
        %v603 = vshrl.u32 %v602, 7
        %v604 = vsub.s32 3, %v603
        %v605 = vrot.slane %v201, %v604
        %v606 = vmul.f32 %v597, %v601
        %v607 = vmul.f32 %v596, %v605
        %s608 = scalar_lea.vmem %s0, 24
        %v609 = vld [vmem:[%s608] sm:$0xff]
        %v611 = vsel %vm229, %v609, 0
        %v614 = vsel %vm233, %v606, 0
        %v617 = vsel %vm233, %v607, 0
        %619 = vmatprep.subr.mxu0 %v617
        %620 = vmatpush1.msra.mxu0 %v614
        %621 = vmatprep.subr.mxu0 0.0
        %622 = vmatpush1.msra.mxu0 0.0
        %623 = vmatprep.subr.mxu0 0.0
        %624 = vmatpush1.msra.mxu0 0.0
        %625 = vmatprep.subr.mxu0 0.0
        %626 = vmatpush1.msra.mxu0 0.0
        %627 = vmatprep.subr.mxu0 0.0
        %628 = vmatpush1.msra.mxu0 0.0
        %629 = vmatprep.subr.mxu0 0.0
        %630 = vmatpush1.msra.mxu0 0.0
        %631 = vmatprep.subr.mxu0 0.0
        %632 = vmatpush1.msra.mxu0 0.0
        %633 = vmatprep.subr.mxu0 0.0
        %634 = vmatpush1.msra.mxu0 0.0
        %635 = vmatprep.subr.mxu0 0.0
        %636 = vmatpush1.msra.mxu0 0.0
        %637 = vmatprep.subr.mxu0 0.0
        %638 = vmatpush1.msra.mxu0 0.0
        %639 = vmatprep.subr.mxu0 0.0
        %640 = vmatpush1.msra.mxu0 0.0
        %641 = vmatprep.subr.mxu0 0.0
        %642 = vmatpush1.msra.mxu0 0.0
        %643 = vmatprep.subr.mxu0 0.0
        %644 = vmatpush1.msra.mxu0 0.0
        %645 = vmatprep.subr.mxu0 0.0
        %646 = vmatpush1.msra.mxu0 0.0
        %647 = vmatprep.subr.mxu0 0.0
        %648 = vmatpush1.msra.mxu0 0.0
        %649 = vmatprep.subr.mxu0 0.0
        %650 = vmatpush1.msra.mxu0 0.0
        %651 = vmatprep.subr.mxu0 0.0
        %652 = vmatpush1.msra.mxu0 0.0
        %653 = vmatprep.subr.mxu0 0.0
        %654 = vmatpush1.msra.mxu0 0.0
        %655 = vmatprep.subr.mxu0 0.0
        %656 = vmatpush1.msra.mxu0 0.0
        %657 = vmatprep.subr.mxu0 0.0
        %658 = vmatpush1.msra.mxu0 0.0
        %659 = vmatprep.subr.mxu0 0.0
        %660 = vmatpush1.msra.mxu0 0.0
        %661 = vmatprep.subr.mxu0 0.0
        %662 = vmatpush1.msra.mxu0 0.0
        %663 = vmatprep.subr.mxu0 0.0
        %664 = vmatpush1.msra.mxu0 0.0
        %665 = vmatprep.subr.mxu0 0.0
        %666 = vmatpush1.msra.mxu0 0.0
        %667 = vmatprep.subr.mxu0 0.0
        %668 = vmatpush1.msra.mxu0 0.0
        %669 = vmatprep.subr.mxu0 0.0
        %670 = vmatpush1.msra.mxu0 0.0
        %671 = vmatprep.subr.mxu0 0.0
        %672 = vmatpush1.msra.mxu0 0.0
        %673 = vmatprep.subr.mxu0 0.0
        %674 = vmatpush1.msra.mxu0 0.0
        %675 = vmatprep.subr.mxu0 0.0
        %676 = vmatpush1.msra.mxu0 0.0
        %677 = vmatprep.subr.mxu0 0.0
        %678 = vmatpush1.msra.mxu0 0.0
        %679 = vmatprep.subr.mxu0 0.0
        %680 = vmatpush1.msra.mxu0 0.0
        %681 = vmatprep.subr.mxu0 0.0
        %682 = vmatpush1.msra.mxu0 0.0
        %683 = vmatprep.mubr.f32.mxu0 0.0
        %684 = vmatmul.mubr.f32.gmra.mrb[0].mxu0 %v611
        %v685 = vpop.f32.mrb[0].mxu0
        %v686 = vadd.f32 0.0, %v685
        %v687 = vpop.f32.mrb[0].mxu0
        %v688 = vadd.f32 0.0, %v687
        %689 = vdwg.mxu0
        %v690 = vadd.f32 %v589, %v686
        %v691 = vadd.f32 %v590, %v688
        %692 = vrot.lane.b32.xlu0 %v199, 127
        %v693 = vpop.permute.xlu0 %692
        %694 = vrot.lane.b32.xlu0 %v207, 127
        %v695 = vpop.permute.xlu0 %694
        %vm696 = vcmp.lt.s32.totalorder %v214, 127
        %v697 = vsel %vm696, %v693, %v695
        %v698 = vsel %vm696, %v695, %v693
        %v699 = vlaneseq
        %v700 = vshrl.u32 %v699, 7
        %v701 = vsub.s32 5, %v700
        %v702 = vrot.slane %v200, %v701
        %v703 = vlaneseq
        %v704 = vshrl.u32 %v703, 7
        %v705 = vsub.s32 5, %v704
        %v706 = vrot.slane %v201, %v705
        %v707 = vmul.f32 %v697, %v702
        %v708 = vmul.f32 %v698, %v706
        %s709 = scalar_lea.vmem %s0, 40
        %v710 = vld [vmem:[%s709] sm:$0xff]
        %v712 = vsel %vm229, %v710, 0
        %v715 = vsel %vm233, %v707, 0
        %v718 = vsel %vm233, %v708, 0
        %720 = vmatprep.subr.mxu0 %v718
        %721 = vmatpush1.msra.mxu0 %v715
        %722 = vmatprep.subr.mxu0 0.0
        %723 = vmatpush1.msra.mxu0 0.0
        %724 = vmatprep.subr.mxu0 0.0
        %725 = vmatpush1.msra.mxu0 0.0
        %726 = vmatprep.subr.mxu0 0.0
        %727 = vmatpush1.msra.mxu0 0.0
        %728 = vmatprep.subr.mxu0 0.0
        %729 = vmatpush1.msra.mxu0 0.0
        %730 = vmatprep.subr.mxu0 0.0
        %731 = vmatpush1.msra.mxu0 0.0
        %732 = vmatprep.subr.mxu0 0.0
        %733 = vmatpush1.msra.mxu0 0.0
        %734 = vmatprep.subr.mxu0 0.0
        %735 = vmatpush1.msra.mxu0 0.0
        %736 = vmatprep.subr.mxu0 0.0
        %737 = vmatpush1.msra.mxu0 0.0
        %738 = vmatprep.subr.mxu0 0.0
        %739 = vmatpush1.msra.mxu0 0.0
        %740 = vmatprep.subr.mxu0 0.0
        %741 = vmatpush1.msra.mxu0 0.0
        %742 = vmatprep.subr.mxu0 0.0
        %743 = vmatpush1.msra.mxu0 0.0
        %744 = vmatprep.subr.mxu0 0.0
        %745 = vmatpush1.msra.mxu0 0.0
        %746 = vmatprep.subr.mxu0 0.0
        %747 = vmatpush1.msra.mxu0 0.0
        %748 = vmatprep.subr.mxu0 0.0
        %749 = vmatpush1.msra.mxu0 0.0
        %750 = vmatprep.subr.mxu0 0.0
        %751 = vmatpush1.msra.mxu0 0.0
        %752 = vmatprep.subr.mxu0 0.0
        %753 = vmatpush1.msra.mxu0 0.0
        %754 = vmatprep.subr.mxu0 0.0
        %755 = vmatpush1.msra.mxu0 0.0
        %756 = vmatprep.subr.mxu0 0.0
        %757 = vmatpush1.msra.mxu0 0.0
        %758 = vmatprep.subr.mxu0 0.0
        %759 = vmatpush1.msra.mxu0 0.0
        %760 = vmatprep.subr.mxu0 0.0
        %761 = vmatpush1.msra.mxu0 0.0
        %762 = vmatprep.subr.mxu0 0.0
        %763 = vmatpush1.msra.mxu0 0.0
        %764 = vmatprep.subr.mxu0 0.0
        %765 = vmatpush1.msra.mxu0 0.0
        %766 = vmatprep.subr.mxu0 0.0
        %767 = vmatpush1.msra.mxu0 0.0
        %768 = vmatprep.subr.mxu0 0.0
        %769 = vmatpush1.msra.mxu0 0.0
        %770 = vmatprep.subr.mxu0 0.0
        %771 = vmatpush1.msra.mxu0 0.0
        %772 = vmatprep.subr.mxu0 0.0
        %773 = vmatpush1.msra.mxu0 0.0
        %774 = vmatprep.subr.mxu0 0.0
        %775 = vmatpush1.msra.mxu0 0.0
        %776 = vmatprep.subr.mxu0 0.0
        %777 = vmatpush1.msra.mxu0 0.0
        %778 = vmatprep.subr.mxu0 0.0
        %779 = vmatpush1.msra.mxu0 0.0
        %780 = vmatprep.subr.mxu0 0.0
        %781 = vmatpush1.msra.mxu0 0.0
        %782 = vmatprep.subr.mxu0 0.0
        %783 = vmatpush1.msra.mxu0 0.0
        %784 = vmatprep.mubr.f32.mxu0 0.0
        %785 = vmatmul.mubr.f32.gmra.mrb[0].mxu0 %v712
        %v786 = vpop.f32.mrb[0].mxu0
        %v787 = vadd.f32 0.0, %v786
        %v788 = vpop.f32.mrb[0].mxu0
        %v789 = vadd.f32 0.0, %v788
        %790 = vdwg.mxu0
        %v791 = vadd.f32 %v690, %v787
        %v792 = vadd.f32 %v691, %v789
        %793 = vrot.lane.b32.xlu0 %v199, 113
        %v794 = vpop.permute.xlu0 %793
        %795 = vrot.lane.b32.xlu0 %v207, 113
        %v796 = vpop.permute.xlu0 %795
        %vm797 = vcmp.lt.s32.totalorder %v214, 113
        %v798 = vsel %vm797, %v794, %v796
        %v799 = vsel %vm797, %v796, %v794
        %v800 = vlaneseq
        %v801 = vshrl.u32 %v800, 7
        %v802 = vsub.s32 6, %v801
        %v803 = vrot.slane %v200, %v802
        %v804 = vlaneseq
        %v805 = vshrl.u32 %v804, 7
        %v806 = vsub.s32 6, %v805
        %v807 = vrot.slane %v201, %v806
        %v808 = vmul.f32 %v798, %v803
        %v809 = vmul.f32 %v799, %v807
        %s810 = scalar_lea.vmem %s0, 48
        %v811 = vld [vmem:[%s810] sm:$0xff]
        %v813 = vsel %vm229, %v811, 0
        %v816 = vsel %vm233, %v808, 0
        %v819 = vsel %vm233, %v809, 0
        %821 = vmatprep.subr.mxu0 %v819
        %822 = vmatpush1.msra.mxu0 %v816
        %823 = vmatprep.subr.mxu0 0.0
        %824 = vmatpush1.msra.mxu0 0.0
        %825 = vmatprep.subr.mxu0 0.0
        %826 = vmatpush1.msra.mxu0 0.0
        %827 = vmatprep.subr.mxu0 0.0
        %828 = vmatpush1.msra.mxu0 0.0
        %829 = vmatprep.subr.mxu0 0.0
        %830 = vmatpush1.msra.mxu0 0.0
        %831 = vmatprep.subr.mxu0 0.0
        %832 = vmatpush1.msra.mxu0 0.0
        %833 = vmatprep.subr.mxu0 0.0
        %834 = vmatpush1.msra.mxu0 0.0
        %835 = vmatprep.subr.mxu0 0.0
        %836 = vmatpush1.msra.mxu0 0.0
        %837 = vmatprep.subr.mxu0 0.0
        %838 = vmatpush1.msra.mxu0 0.0
        %839 = vmatprep.subr.mxu0 0.0
        %840 = vmatpush1.msra.mxu0 0.0
        %841 = vmatprep.subr.mxu0 0.0
        %842 = vmatpush1.msra.mxu0 0.0
        %843 = vmatprep.subr.mxu0 0.0
        %844 = vmatpush1.msra.mxu0 0.0
        %845 = vmatprep.subr.mxu0 0.0
        %846 = vmatpush1.msra.mxu0 0.0
        %847 = vmatprep.subr.mxu0 0.0
        %848 = vmatpush1.msra.mxu0 0.0
        %849 = vmatprep.subr.mxu0 0.0
        %850 = vmatpush1.msra.mxu0 0.0
        %851 = vmatprep.subr.mxu0 0.0
        %852 = vmatpush1.msra.mxu0 0.0
        %853 = vmatprep.subr.mxu0 0.0
        %854 = vmatpush1.msra.mxu0 0.0
        %855 = vmatprep.subr.mxu0 0.0
        %856 = vmatpush1.msra.mxu0 0.0
        %857 = vmatprep.subr.mxu0 0.0
        %858 = vmatpush1.msra.mxu0 0.0
        %859 = vmatprep.subr.mxu0 0.0
        %860 = vmatpush1.msra.mxu0 0.0
        %861 = vmatprep.subr.mxu0 0.0
        %862 = vmatpush1.msra.mxu0 0.0
        %863 = vmatprep.subr.mxu0 0.0
        %864 = vmatpush1.msra.mxu0 0.0
        %865 = vmatprep.subr.mxu0 0.0
        %866 = vmatpush1.msra.mxu0 0.0
        %867 = vmatprep.subr.mxu0 0.0
        %868 = vmatpush1.msra.mxu0 0.0
        %869 = vmatprep.subr.mxu0 0.0
        %870 = vmatpush1.msra.mxu0 0.0
        %871 = vmatprep.subr.mxu0 0.0
        %872 = vmatpush1.msra.mxu0 0.0
        %873 = vmatprep.subr.mxu0 0.0
        %874 = vmatpush1.msra.mxu0 0.0
        %875 = vmatprep.subr.mxu0 0.0
        %876 = vmatpush1.msra.mxu0 0.0
        %877 = vmatprep.subr.mxu0 0.0
        %878 = vmatpush1.msra.mxu0 0.0
        %879 = vmatprep.subr.mxu0 0.0
        %880 = vmatpush1.msra.mxu0 0.0
        %881 = vmatprep.subr.mxu0 0.0
        %882 = vmatpush1.msra.mxu0 0.0
        %883 = vmatprep.subr.mxu0 0.0
        %884 = vmatpush1.msra.mxu0 0.0
        %885 = vmatprep.mubr.f32.mxu0 0.0
        %886 = vmatmul.mubr.f32.gmra.mrb[0].mxu0 %v813
        %v887 = vpop.f32.mrb[0].mxu0
        %v888 = vadd.f32 0.0, %v887
        %v889 = vpop.f32.mrb[0].mxu0
        %v890 = vadd.f32 0.0, %v889
        %891 = vdwg.mxu0
        %v892 = vadd.f32 %v791, %v888
        %v893 = vadd.f32 %v792, %v890
        %894 = vrot.lane.b32.xlu0 %v199, 112
        %v895 = vpop.permute.xlu0 %894
        %896 = vrot.lane.b32.xlu0 %v207, 112
        %v897 = vpop.permute.xlu0 %896
        %vm898 = vcmp.lt.s32.totalorder %v214, 112
        %v899 = vsel %vm898, %v895, %v897
        %v900 = vsel %vm898, %v897, %v895
        %v901 = vlaneseq
        %v902 = vshrl.u32 %v901, 7
        %v903 = vsub.s32 7, %v902
        %v904 = vrot.slane %v200, %v903
        %v905 = vlaneseq
        %v906 = vshrl.u32 %v905, 7
        %v907 = vsub.s32 7, %v906
        %v908 = vrot.slane %v201, %v907
        %v909 = vmul.f32 %v899, %v904
        %v910 = vmul.f32 %v900, %v908
        %s911 = scalar_lea.vmem %s0, 56
        %v912 = vld [vmem:[%s911] sm:$0xff]
        %v914 = vsel %vm229, %v912, 0
        %v917 = vsel %vm233, %v909, 0
        %v920 = vsel %vm233, %v910, 0
        %922 = vmatprep.subr.mxu0 %v920
        %923 = vmatpush1.msra.mxu0 %v917
        %924 = vmatprep.subr.mxu0 0.0
        %925 = vmatpush1.msra.mxu0 0.0
        %926 = vmatprep.subr.mxu0 0.0
        %927 = vmatpush1.msra.mxu0 0.0
        %928 = vmatprep.subr.mxu0 0.0
        %929 = vmatpush1.msra.mxu0 0.0
        %930 = vmatprep.subr.mxu0 0.0
        %931 = vmatpush1.msra.mxu0 0.0
        %932 = vmatprep.subr.mxu0 0.0
        %933 = vmatpush1.msra.mxu0 0.0
        %934 = vmatprep.subr.mxu0 0.0
        %935 = vmatpush1.msra.mxu0 0.0
        %936 = vmatprep.subr.mxu0 0.0
        %937 = vmatpush1.msra.mxu0 0.0
        %938 = vmatprep.subr.mxu0 0.0
        %939 = vmatpush1.msra.mxu0 0.0
        %940 = vmatprep.subr.mxu0 0.0
        %941 = vmatpush1.msra.mxu0 0.0
        %942 = vmatprep.subr.mxu0 0.0
        %943 = vmatpush1.msra.mxu0 0.0
        %944 = vmatprep.subr.mxu0 0.0
        %945 = vmatpush1.msra.mxu0 0.0
        %946 = vmatprep.subr.mxu0 0.0
        %947 = vmatpush1.msra.mxu0 0.0
        %948 = vmatprep.subr.mxu0 0.0
        %949 = vmatpush1.msra.mxu0 0.0
        %950 = vmatprep.subr.mxu0 0.0
        %951 = vmatpush1.msra.mxu0 0.0
        %952 = vmatprep.subr.mxu0 0.0
        %953 = vmatpush1.msra.mxu0 0.0
        %954 = vmatprep.subr.mxu0 0.0
        %955 = vmatpush1.msra.mxu0 0.0
        %956 = vmatprep.subr.mxu0 0.0
        %957 = vmatpush1.msra.mxu0 0.0
        %958 = vmatprep.subr.mxu0 0.0
        %959 = vmatpush1.msra.mxu0 0.0
        %960 = vmatprep.subr.mxu0 0.0
        %961 = vmatpush1.msra.mxu0 0.0
        %962 = vmatprep.subr.mxu0 0.0
        %963 = vmatpush1.msra.mxu0 0.0
        %964 = vmatprep.subr.mxu0 0.0
        %965 = vmatpush1.msra.mxu0 0.0
        %966 = vmatprep.subr.mxu0 0.0
        %967 = vmatpush1.msra.mxu0 0.0
        %968 = vmatprep.subr.mxu0 0.0
        %969 = vmatpush1.msra.mxu0 0.0
        %970 = vmatprep.subr.mxu0 0.0
        %971 = vmatpush1.msra.mxu0 0.0
        %972 = vmatprep.subr.mxu0 0.0
        %973 = vmatpush1.msra.mxu0 0.0
        %974 = vmatprep.subr.mxu0 0.0
        %975 = vmatpush1.msra.mxu0 0.0
        %976 = vmatprep.subr.mxu0 0.0
        %977 = vmatpush1.msra.mxu0 0.0
        %978 = vmatprep.subr.mxu0 0.0
        %979 = vmatpush1.msra.mxu0 0.0
        %980 = vmatprep.subr.mxu0 0.0
        %981 = vmatpush1.msra.mxu0 0.0
        %982 = vmatprep.subr.mxu0 0.0
        %983 = vmatpush1.msra.mxu0 0.0
        %984 = vmatprep.subr.mxu0 0.0
        %985 = vmatpush1.msra.mxu0 0.0
        %986 = vmatprep.mubr.f32.mxu0 0.0
        %987 = vmatmul.mubr.f32.gmra.mrb[0].mxu0 %v914
        %v988 = vpop.f32.mrb[0].mxu0
        %v989 = vadd.f32 0.0, %v988
        %v990 = vpop.f32.mrb[0].mxu0
        %v991 = vadd.f32 0.0, %v990
        %992 = vdwg.mxu0
        %v993 = vadd.f32 %v892, %v989
        %v994 = vadd.f32 %v893, %v991
        %995 = vrot.lane.b32.xlu0 %v199, 111
        %v996 = vpop.permute.xlu0 %995
        %997 = vrot.lane.b32.xlu0 %v207, 111
        %v998 = vpop.permute.xlu0 %997
        %vm999 = vcmp.lt.s32.totalorder %v214, 111
        %v1000 = vsel %vm999, %v996, %v998
        %v1001 = vsel %vm999, %v998, %v996
        %v1002 = vlaneseq
        %v1003 = vshrl.u32 %v1002, 7
        %v1004 = vsub.s32 0, %v1003
        %v1005 = vrot.slane %v202, %v1004
        %v1006 = vlaneseq
        %v1007 = vshrl.u32 %v1006, 7
        %v1008 = vsub.s32 0, %v1007
        %v1009 = vrot.slane %v203, %v1008
        %v1010 = vmul.f32 %v1000, %v1005
        %v1011 = vmul.f32 %v1001, %v1009
        %s1012 = scalar_lea.vmem %s0, 64
        %v1013 = vld [vmem:[%s1012] sm:$0xff]
        %v1015 = vsel %vm229, %v1013, 0
        %v1018 = vsel %vm233, %v1010, 0
        %v1021 = vsel %vm233, %v1011, 0
        %1023 = vmatprep.subr.mxu0 %v1021
        %1024 = vmatpush1.msra.mxu0 %v1018
        %1025 = vmatprep.subr.mxu0 0.0
        %1026 = vmatpush1.msra.mxu0 0.0
        %1027 = vmatprep.subr.mxu0 0.0
        %1028 = vmatpush1.msra.mxu0 0.0
        %1029 = vmatprep.subr.mxu0 0.0
        %1030 = vmatpush1.msra.mxu0 0.0
        %1031 = vmatprep.subr.mxu0 0.0
        %1032 = vmatpush1.msra.mxu0 0.0
        %1033 = vmatprep.subr.mxu0 0.0
        %1034 = vmatpush1.msra.mxu0 0.0
        %1035 = vmatprep.subr.mxu0 0.0
        %1036 = vmatpush1.msra.mxu0 0.0
        %1037 = vmatprep.subr.mxu0 0.0
        %1038 = vmatpush1.msra.mxu0 0.0
        %1039 = vmatprep.subr.mxu0 0.0
        %1040 = vmatpush1.msra.mxu0 0.0
        %1041 = vmatprep.subr.mxu0 0.0
        %1042 = vmatpush1.msra.mxu0 0.0
        %1043 = vmatprep.subr.mxu0 0.0
        %1044 = vmatpush1.msra.mxu0 0.0
        %1045 = vmatprep.subr.mxu0 0.0
        %1046 = vmatpush1.msra.mxu0 0.0
        %1047 = vmatprep.subr.mxu0 0.0
        %1048 = vmatpush1.msra.mxu0 0.0
        %1049 = vmatprep.subr.mxu0 0.0
        %1050 = vmatpush1.msra.mxu0 0.0
        %1051 = vmatprep.subr.mxu0 0.0
        %1052 = vmatpush1.msra.mxu0 0.0
        %1053 = vmatprep.subr.mxu0 0.0
        %1054 = vmatpush1.msra.mxu0 0.0
        %1055 = vmatprep.subr.mxu0 0.0
        %1056 = vmatpush1.msra.mxu0 0.0
        %1057 = vmatprep.subr.mxu0 0.0
        %1058 = vmatpush1.msra.mxu0 0.0
        %1059 = vmatprep.subr.mxu0 0.0
        %1060 = vmatpush1.msra.mxu0 0.0
        %1061 = vmatprep.subr.mxu0 0.0
        %1062 = vmatpush1.msra.mxu0 0.0
        %1063 = vmatprep.subr.mxu0 0.0
        %1064 = vmatpush1.msra.mxu0 0.0
        %1065 = vmatprep.subr.mxu0 0.0
        %1066 = vmatpush1.msra.mxu0 0.0
        %1067 = vmatprep.subr.mxu0 0.0
        %1068 = vmatpush1.msra.mxu0 0.0
        %1069 = vmatprep.subr.mxu0 0.0
        %1070 = vmatpush1.msra.mxu0 0.0
        %1071 = vmatprep.subr.mxu0 0.0
        %1072 = vmatpush1.msra.mxu0 0.0
        %1073 = vmatprep.subr.mxu0 0.0
        %1074 = vmatpush1.msra.mxu0 0.0
        %1075 = vmatprep.subr.mxu0 0.0
        %1076 = vmatpush1.msra.mxu0 0.0
        %1077 = vmatprep.subr.mxu0 0.0
        %1078 = vmatpush1.msra.mxu0 0.0
        %1079 = vmatprep.subr.mxu0 0.0
        %1080 = vmatpush1.msra.mxu0 0.0
        %1081 = vmatprep.subr.mxu0 0.0
        %1082 = vmatpush1.msra.mxu0 0.0
        %1083 = vmatprep.subr.mxu0 0.0
        %1084 = vmatpush1.msra.mxu0 0.0
        %1085 = vmatprep.subr.mxu0 0.0
        %1086 = vmatpush1.msra.mxu0 0.0
        %1087 = vmatprep.mubr.f32.mxu0 0.0
        %1088 = vmatmul.mubr.f32.gmra.mrb[0].mxu0 %v1015
        %v1089 = vpop.f32.mrb[0].mxu0
        %v1090 = vadd.f32 0.0, %v1089
        %v1091 = vpop.f32.mrb[0].mxu0
        %v1092 = vadd.f32 0.0, %v1091
        %1093 = vdwg.mxu0
        %v1094 = vadd.f32 %v993, %v1090
        %v1095 = vadd.f32 %v994, %v1092
        %v1096 = vld [vmem:[%s1] sm:$0xff]
        %v1097 = vadd.f32 %v1094, %v1095
        %1098 = vadd.xlane.f32.xlu0 %v1097
        %v1099 = vpop.xlane.xlu0 %1098
        %v1100 = vrcp.pop 256.0
        %v1101 = vmul.f32 %v1099, %v1100
        %v1102 = vsub.f32 %v1094, %v1101
        %v1103 = vsub.f32 %v1095, %v1101
        %v1104 = vmul.f32 %v1102, %v1102
        %v1105 = vmul.f32 %v1103, %v1103
        %v1106 = vadd.f32 %v1104, %v1105
        %1107 = vadd.xlane.f32.xlu0 %v1106
        %v1108 = vpop.xlane.xlu0 %1107
        %v1109 = vmul.f32 %v1108, %v1100
        %v1110 = vadd.f32 %v1109, 1e-05
        %v1111 = vrsqrt.pop %v1110
        %v1112 = vmul.f32 %v1096, %v1111
        %v1113 = vmul.f32 %v1101, %v1112
        %1115 = vrot.lane.b32.xlu0 %v1113, 1
        %v1116 = vpop.permute.xlu0 %1115
        %v1118 = vsub.f32 %v1096, %v1116
        %1120 = vset.pattern.permute.xlu0 0
        %1121 = vperm.xlu0 %1120, %v1112
        %v1122 = vpop.permute.xlu0 %1121
        %v1124 = vmul.f32 %v1094, %v1122
        %v1125 = vmul.f32 %v1095, %v1122
        %1127 = vset.pattern.permute.xlu0 1
        %1128 = vperm.xlu0 %1127, %v1118
        %v1129 = vpop.permute.xlu0 %1128
        %v1131 = vadd.f32 %v1124, %v1129
        %v1132 = vadd.f32 %v1125, %v1129
        %v1133 = vmax.f32 %v1131, 0.0
        %v1134 = vmax.f32 %v1132, 0.0
        %1135 = vst [vmem:[%s191] sm:$0xff] %v1133
        %1136 = vst [vmem:[%s191 + $0x8] sm:$0xff] %v1134
        %s1137 = sand.u32 %s115, 1
        %s1138 = scalar_lea.sflag [#allocation3], %s1137
        %s1139 = sand.u32 %s115, 1
        %s1140 = smul.addr %s1139, 16
        %s1141 = scalar_lea.vmem [#allocation2], %s1140
        // Predicated region
        $region37: #{tpu_custom_call.1} parent=35 // pred_check
          %p1142 = pneg %p125
        $region38: #{tpu_custom_call.1} parent=35 // pred_check_branch
          %1144 = sbr.rel (%p1142) target = $region40
        $region39: #{tpu_custom_call.1} parent=35 // pred_region
          %s1145 = smul.u32 2, %s18
          %s1147 = ssub.s32 256, 256
          %1148 = vsyncadd %s1138, %s1147
          %s1149 = smul.addr %s1145, 128
          %s1150 = scalar_lea.hbm %s4, %s1149
          %s1152 = sshll.u32 %s1141, 4
          %s1153 = int_to_ptr.vmem [resolvable:$true] %s1152
          %1155 = dma.vmem_to_hbm [thread:$0]  %s1153, 256, %s1150, %s1138
        $region40: #{tpu_custom_call.1} parent=35 // pred_fallthru
          _
      $region36: #{tpu_custom_call.1} parent=5 // pred_fallthru
        _
      %p1156 = scmp.le.s32.totalorder 2, %s13
      // Predicated region
      $region41: #{tpu_custom_call.1} parent=5 // pred_check
        %p1157 = pneg %p1156
      $region42: #{tpu_custom_call.1} parent=5 // pred_check_branch
        %1159 = sbr.rel (%p1157) target = $region44
      $region43: #{tpu_custom_call.1} parent=5 // pred_region
        %s1160 = ssub.s32 %s13, 2
        // Predicated region
        $region45: #{tpu_custom_call.1} parent=43 // pred_check
          %p1161 = pneg %p131
        $region46: #{tpu_custom_call.1} parent=43 // pred_check_branch
          %1163 = sbr.rel (%p1161) target = $region48
        $region47: #{tpu_custom_call.1} parent=43 // pred_region
          %s1164 = sand.u32 %s116, 1
          %s1165 = scalar_lea.sflag [#allocation3], %s1164
          %s1166 = sand.u32 %s116, 1
          %s1167 = smul.addr %s1166, 16
          %s1168 = scalar_lea.vmem [#allocation2], %s1167
          %1169 = dma.done %s1165, 256
        $region48: #{tpu_custom_call.1} parent=43 // pred_fallthru
          _
      $region44: #{tpu_custom_call.1} parent=5 // pred_fallthru
        _
    $region6: #{tpu_custom_call.1} parent=1 // loop_footer
      %s17 = sadd.s32 1, %s13
    $region7: #{tpu_custom_call.1} parent=1 // loop_footer_branch
      %12 = sbr.rel target = $region3
    $region8: #{tpu_custom_call.1} parent=1 // loop_exit
      _
    %1170 = vsyncpa [#allocation3], 1
    %s1171 = scalar_lea.sflag [#allocation3], 1
    %1172 = vsyncpa %s1171, 1

</llo_original>
